<compile_context>
chip_gen: v5e
topology: v5e:2x2
jax: 0.10.0
libtpu: 0.0.40
codegen_flags: <defaults>
</compile_context>

<pallas_src>
import functools

import jax
import jax.numpy as jnp
import numpy as np
from jax.experimental import pallas as pl
from jax.experimental.pallas import tpu as pltpu


def _orth_fusion_kernel(inv_ref, g_ref, l_ref, o_ref, *, concat):
    # inv_ref: (B,) f32 in SMEM (1/||g||^2 per batch)
    # g_ref:   (C, 1)   l_ref: (C, T)
    # o_ref:   (2, C, T) when concat else (C, T)
    b = pl.program_id(0)
    inv = inv_ref[b]                                        # scalar f32 (SMEM)

    Lf = l_ref[...].astype(jnp.float32)                     # (C, T)
    # Single (C, T) broadcast of g, reused three times below.
    gb = jnp.broadcast_to(g_ref[...].astype(jnp.float32), Lf.shape)

    # <g, L[:, t]> for every spatial column (reduce over channel/sublane axis).
    dot = jnp.sum(gb * Lf, axis=0, keepdims=True)           # (1, T)

    # 1/||g||^2 folded into the (1, T) row (precomputed on the host).
    orth = Lf - gb * (dot * inv)                            # (C, T)

    if concat:
        # Each half is its own tile slab -> dense, unmasked stores.
        o_ref[0, :, :] = gb.astype(o_ref.dtype)
        o_ref[1, :, :] = orth.astype(o_ref.dtype)
    else:
        o_ref[...] = orth.astype(o_ref.dtype)


def _round_up(x, m):
    return ((x + m - 1) // m) * m


def _pick_tile_hw(hwp, target):
    """Largest multiple of 128 that divides hwp (a multiple of 128) and is
    <= target lanes.  Always >= 128."""
    k = hwp // 128
    t = max(target // 128, 1)
    best = 1
    d = 1
    while d * d <= k:
        if k % d == 0:
            for cand in (d, k // d):
                if cand <= t and cand > best:
                    best = cand
        d += 1
    return best * 128


def _vmem_budget_bytes():
    """Per-generation tiling budget == the vmem_limit we actually request."""
    try:
        cap = pltpu.get_tpu_info().vmem_capacity_bytes
    except Exception:
        cap = 64 * 1024 * 1024  # conservative: v7x per-TensorCore VMEM
    # Half of physical VMEM (leaves headroom for compiler scratch), capped.
    # v5e/v6e (128 MiB) -> 64 MiB; v7x (64 MiB) -> 32 MiB.
    return min(cap // 2, 64 * 1024 * 1024)


def orthogonal_fusion(local_feat, global_feat, concat=True):
    """local_feat: (B, C, H, W), global_feat: (B, C) -> (B, 2C or C, H, W)."""
    B, C, H, W = local_feat.shape
    HW = H * W
    out_c = 2 * C if concat else C
    itemsize = jnp.dtype(local_feat.dtype).itemsize

    # --- tiny host-side precompute: 1/||g||^2 per batch (SMEM input) -------
    g32 = global_feat.astype(jnp.float32)
    inv_norm = 1.0 / jnp.sum(g32 * g32, axis=1)            # (B,) f32
    g_col = global_feat.reshape(B, C, 1)

    # --- spatial padding: only up to the next multiple of 128 --------------
    HWp = _round_up(HW, 128)
    local_flat = local_feat.reshape(B, C, HW)
    if HWp != HW:
        # Ragged-HW fallback; the common power-of-two case skips this.
        # TODO(synk): handle the ragged tail in-kernel (masked store) to avoid
        # the pad copy entirely.
        local_flat = jnp.pad(local_flat, ((0, 0), (0, 0), (0, HWp - HW)))

    # --- choose a lane-aligned spatial tile ---------------------------------
    vmem_budget = _vmem_budget_bytes()
    # Per-step bytes per lane: double-buffered input + output tiles, plus the
    # f32 compute temporaries held live inside the kernel (Lf, gb, orth).
    bytes_per_lane = 2 * (C + out_c) * itemsize + 3 * C * 4 + 16
    if bytes_per_lane * 128 > vmem_budget:
        # TODO(synk): add a channel-tiled fallback for extremely large C.
        raise ValueError(
            f"OrthogonalFusion: C={C} too large for a single 128-lane tile "
            f"within the {vmem_budget} byte VMEM budget.")
    max_tile = max(128, (vmem_budget // bytes_per_lane) // 128 * 128)
    target = min(4096, max_tile, HWp)
    tile_hw = _pick_tile_hw(HWp, target)

    # v7x has 2 TensorCores: avoid a degenerate single-step grid when B == 1.
    if B == 1 and HWp // tile_hw < 2 and HWp >= 256:
        tile_hw = _pick_tile_hw(HWp, HWp // 2)

    n_hw_tiles = HWp // tile_hw
    grid = (B, n_hw_tiles)

    if concat:
        out_shape = jax.ShapeDtypeStruct((B, 2, C, HWp), local_feat.dtype)
        out_spec = pl.BlockSpec((None, 2, C, tile_hw), lambda b, t: (b, 0, 0, t))
    else:
        out_shape = jax.ShapeDtypeStruct((B, C, HWp), local_feat.dtype)
        out_spec = pl.BlockSpec((None, C, tile_hw), lambda b, t: (b, 0, t))

    out = pl.pallas_call(
        functools.partial(_orth_fusion_kernel, concat=concat),
        out_shape=out_shape,
        grid=grid,
        in_specs=[
            pl.BlockSpec(memory_space=pltpu.MemorySpace.SMEM),             # inv_norm (B,)
            pl.BlockSpec((None, C, 1), lambda b, t: (b, 0, 0)),            # global_feat
            pl.BlockSpec((None, C, tile_hw), lambda b, t: (b, 0, t)),      # local_feat
        ],
        out_specs=out_spec,
        compiler_params=pltpu.CompilerParams(
            dimension_semantics=("parallel", "parallel"),
            vmem_limit_bytes=vmem_budget,
        ),
    )(inv_norm, g_col, local_flat)

    # (B, 2, C, HWp) is contiguous-identical to (B, 2C, HWp); for C not a
    # multiple of the sublane pack XLA may relayout here (see header note).
    out = out.reshape(B, out_c, HWp)
    if HWp != HW:
        out = out[:, :, :HW]
    return out.reshape(B, out_c, H, W)


def _reference(local_feat, global_feat, concat=True):
    """Pure-JAX reference mirroring the PyTorch forward."""
    B, C, H, W = local_feat.shape
    g = global_feat
    norm_sq = jnp.sum(g * g, axis=1)                                   # (B,)
    flat = local_feat.reshape(B, C, H * W)                             # (B,C,HW)
    proj = jnp.einsum('bc,bcn->bn', g, flat)                           # (B,HW)
    proj = jnp.einsum('bc,bn->bcn', g, proj).reshape(B, C, H, W)
    proj = proj / norm_sq[:, None, None, None]
    orth = local_feat - proj
    if concat:
        g_b = jnp.broadcast_to(g[:, :, None, None], orth.shape)
        return jnp.concatenate([g_b, orth], axis=1)
    return orth


if __name__ == "__main__":
    key = jax.random.PRNGKey(0)
    k1, k2, k3, k4 = jax.random.split(key, 4)

    # Main case: HW is a multiple of 128 -> no-pad fast path.
    B, C, H, W = 2, 4, 16, 16
    local_feat = jax.random.normal(k1, (B, C, H, W), dtype=jnp.float32)
    global_feat = jax.random.normal(k2, (B, C), dtype=jnp.float32)

    out = orthogonal_fusion(local_feat, global_feat, concat=True)
    out = jax.block_until_ready(out)
    ref = _reference(local_feat, global_feat, concat=True)
    assert out.shape == (B, 2 * C, H, W), out.shape
    np.testing.assert_allclose(np.asarray(out), np.asarray(ref),
                               rtol=1e-5, atol=1e-5)

    out2 = orthogonal_fusion(local_feat, global_feat, concat=False)
    out2 = jax.block_until_ready(out2)
    ref2 = _reference(local_feat, global_feat, concat=False)
    assert out2.shape == (B, C, H, W), out2.shape
    np.testing.assert_allclose(np.asarray(out2), np.asarray(ref2),
                               rtol=1e-5, atol=1e-5)

    # Ragged case: HW % 128 != 0 exercises the pad-to-128 fallback.
    B2, C2, H2, W2 = 1, 6, 10, 11
    lf2 = jax.random.normal(k3, (B2, C2, H2, W2), dtype=jnp.float32)
    gf2 = jax.random.normal(k4, (B2, C2), dtype=jnp.float32)
    out3 = jax.block_until_ready(orthogonal_fusion(lf2, gf2, concat=True))
    ref3 = _reference(lf2, gf2, concat=True)
    assert out3.shape == (B2, 2 * C2, H2, W2), out3.shape
    np.testing.assert_allclose(np.asarray(out3), np.asarray(ref3),
                               rtol=1e-5, atol=1e-5)

    print("KERNEL_OK")
</pallas_src>

<mosaic_0001>
module attributes {stable_mosaic.version = 11 : i64} {
  func.func @_orth_fusion_kernel(%arg0: i32, %arg1: i32, %arg2: memref<2xf32, #tpu.memory_space<smem>>, %arg3: memref<1x4x1xf32, #tpu.memory_space<vmem>>, %arg4: memref<1x4x256xf32, #tpu.memory_space<vmem>>, %arg5: memref<1x2x4x256xf32, #tpu.memory_space<vmem>>) attributes {dimension_semantics = [#tpu.dimension_semantics<parallel>, #tpu.dimension_semantics<parallel>], iteration_bounds = array<i64: 2, 1>, scalar_prefetch = 0 : i64, scratch_operands = 0 : i64, tpu.core_type = #tpu.core_type<tc>, window_params = [{transform_indices = @transform_0, window_bounds = array<i64: 2>}, {transform_indices = @transform_1, window_bounds = array<i64: 1, 4, 1>}, {transform_indices = @transform_2, window_bounds = array<i64: 1, 4, 256>}, {transform_indices = @transform_3, window_bounds = array<i64: 1, 2, 4, 256>}]} {
    %0 = arith.index_cast %arg0 : i32 to index
    %1 = memref.load %arg2[%0] : memref<2xf32, #tpu.memory_space<smem>>
    %c0 = arith.constant 0 : index
    %c0_0 = arith.constant 0 : index
    %c0_1 = arith.constant 0 : index
    %2 = vector.load %arg4[%c0, %c0_0, %c0_1] : memref<1x4x256xf32, #tpu.memory_space<vmem>>, vector<1x4x256xf32>
    %3 = vector.shape_cast %2 : vector<1x4x256xf32> to vector<4x256xf32>
    %c0_2 = arith.constant 0 : index
    %c0_3 = arith.constant 0 : index
    %c0_4 = arith.constant 0 : index
    %4 = vector.load %arg3[%c0_2, %c0_3, %c0_4] : memref<1x4x1xf32, #tpu.memory_space<vmem>>, vector<1x4x1xf32>
    %5 = vector.shape_cast %4 : vector<1x4x1xf32> to vector<4x1xf32>
    %6 = vector.shape_cast %5 : vector<4x1xf32> to vector<4x1xf32>
    %7 = vector.broadcast %6 : vector<4x1xf32> to vector<4x256xf32>
    %8 = arith.mulf %7, %3 : vector<4x256xf32>
    %cst = arith.constant dense<0.000000e+00> : vector<256xf32>
    %9 = vector.multi_reduction <add>, %8, %cst [0] : vector<4x256xf32> to vector<256xf32>
    %10 = vector.shape_cast %9 : vector<256xf32> to vector<1x256xf32>
    %11 = vector.broadcast %1 : f32 to vector<1x256xf32>
    %12 = arith.mulf %10, %11 : vector<1x256xf32>
    %13 = vector.broadcast %12 : vector<1x256xf32> to vector<4x256xf32>
    %14 = arith.mulf %7, %13 : vector<4x256xf32>
    %15 = arith.subf %3, %14 : vector<4x256xf32>
    %c0_5 = arith.constant 0 : index
    %c0_6 = arith.constant 0 : index
    %c0_7 = arith.constant 0 : index
    %c0_8 = arith.constant 0 : index
    %16 = vector.load %arg5[%c0_5, %c0_6, %c0_7, %c0_8] : memref<1x2x4x256xf32, #tpu.memory_space<vmem>>, vector<1x1x4x256xf32>
    %17 = vector.shape_cast %16 : vector<1x1x4x256xf32> to vector<4x256xf32>
    %18 = vector.shape_cast %7 : vector<4x256xf32> to vector<1x1x4x256xf32>
    tpu.vector_store %arg5[%c0_5, %c0_6, %c0_7, %c0_8], %18 {strides = array<i32>} : memref<1x2x4x256xf32, #tpu.memory_space<vmem>>, vector<1x1x4x256xf32>,
    %c0_9 = arith.constant 0 : index
    %c1 = arith.constant 1 : index
    %c0_10 = arith.constant 0 : index
    %c0_11 = arith.constant 0 : index
    %19 = vector.load %arg5[%c0_9, %c1, %c0_10, %c0_11] : memref<1x2x4x256xf32, #tpu.memory_space<vmem>>, vector<1x1x4x256xf32>
    %20 = vector.shape_cast %19 : vector<1x1x4x256xf32> to vector<4x256xf32>
    %21 = vector.shape_cast %15 : vector<4x256xf32> to vector<1x1x4x256xf32>
    tpu.vector_store %arg5[%c0_9, %c1, %c0_10, %c0_11], %21 {strides = array<i32>} : memref<1x2x4x256xf32, #tpu.memory_space<vmem>>, vector<1x1x4x256xf32>,
    return
  }
  func.func @transform_0(%arg0: i32, %arg1: i32) -> i32 {
    %c0_i32 = arith.constant 0 : i32
    %c0_i32_0 = arith.constant 0 : i32
    return %c0_i32 : i32
  }
  func.func @transform_1(%arg0: i32, %arg1: i32) -> (i32, i32, i32) {
    %c0_i32 = arith.constant 0 : i32
    %c0_i32_0 = arith.constant 0 : i32
    %c0_i32_1 = arith.constant 0 : i32
    return %arg0, %c0_i32, %c0_i32_0 : i32, i32, i32
  }
  func.func @transform_2(%arg0: i32, %arg1: i32) -> (i32, i32, i32) {
    %c0_i32 = arith.constant 0 : i32
    %c0_i32_0 = arith.constant 0 : i32
    return %arg0, %c0_i32, %arg1 : i32, i32, i32
  }
  func.func @transform_3(%arg0: i32, %arg1: i32) -> (i32, i32, i32, i32) {
    %c0_i32 = arith.constant 0 : i32
    %c0_i32_0 = arith.constant 0 : i32
    %c0_i32_1 = arith.constant 0 : i32
    return %arg0, %c0_i32, %c0_i32_0, %arg1 : i32, i32, i32, i32
  }
}

</mosaic_0001>

<llo_original>
// kernel: tpu_custom_call.1
$region0: #{tpu_custom_call.1}
  #allocation0 [shape = 'u32[]', space=smem, size = 0x4, offset = 0x4, fixed_abs, tag = 'smem constant byte address 0x4 - core index']
  #allocation1 [shape = 'u32[72,128]{1,0:T(1,128)}', space=vmem, size = 0x9000, scoped, tag = 'internal scratch']
  %s0 = inlined_call_operand.vmem [shape: f32[2], index: 0, kind: input, shape index: {}]
  %s1 = inlined_call_operand.vmem [shape: f32[2,4,1], index: 1, kind: input, shape index: {}]
  %s2 = inlined_call_operand.hbm [shape: f32[2,4,256], index: 2, kind: input, shape index: {}]
  %s3 = inlined_call_operand.hbm [shape: f32[2,2,4,256], index: 3, kind: output, shape index: {}]
  %s4 = sld [smem:[#allocation0]]
  $region53: #{tpu_custom_call.1} parent=0
    _
  %s6 = ssub.s32 1, %s4
  %s7 = scalar_select 0, %s6, %s4
  $region1: #{tpu_custom_call.1} parent=0
    #allocation2 [shape = 'u8[512]{0}', space=smem, size = 0x200, scoped, tag = 'input window, operand 0, single buffered']
    #allocation3 [shape = 's32[2]{0}', space=sflag, size = 0x8, scoped, tag = 'scoped memory for tpu_custom_call.1']
    #allocation4 [shape = 's32[2]{0}', space=sflag, size = 0x8, scoped, tag = 'scoped memory for tpu_custom_call.1']
    #allocation5 [shape = 's32[2]{0}', space=sflag, size = 0x8, scoped, tag = 'scoped memory for tpu_custom_call.1']
    #allocation6 [shape = 'u8[8192]{0}', space=vmem, size = 0x2000, scoped, tag = 'input window, operand 2']
    #allocation7 [shape = 'u8[16384]{0}', space=vmem, size = 0x4000, scoped, tag = 'output window, operand 0']
    %8 = vsyncpa [#allocation5], 0
    %9 = vsyncpa [#allocation3], 0
    %s10 = scalar_lea.sflag [#allocation3], 1
    %11 = vsyncpa %s10, 0
    %12 = vsyncpa [#allocation4], 0
    %s13 = scalar_lea.sflag [#allocation4], 1
    %14 = vsyncpa %s13, 0
    loop: start=0, step=1, limit=4
    $region2: #{tpu_custom_call.1} parent=1 // loop_pre_header
      _
    $region3: #{tpu_custom_call.1} parent=1 // loop_header
      %s16 = sphi 0, %s20
      %p17 = scmp.ge.s32.totalorder %s16, 4
      %s23 = sphi 0, %s35
      %s24 = sphi 0, %s31
      %s25 = sphi 0, %s23
      %s26 = sphi 0, %s24
      %s27 = sphi 0, %s25
      %s28 = sphi 0, %s26
      %s36 = sphi 0, %s36
      %s38 = sphi 0, %s36
      %s39 = sphi 0, %s38
      %s53 = sphi 0, %s39
      %s59 = sphi 0, %s61
      %s62 = sphi 0, %s59
      %s63 = sphi 0, %s62
      %s79 = sphi 0, %s63
      %s87 = sphi 0, %s89
      %s90 = sphi 0, %s87
      %s91 = sphi 0, %s90
      %s107 = sphi 0, %s91
      %s115 = sphi 0, %s117
      %s118 = sphi 0, %s115
      %s119 = sphi 0, %s118
      %s135 = sphi 0, %s119
    $region4: #{tpu_custom_call.1} parent=1 // loop_header_branch
      %19 = sbr.rel (%p17) target = $region8
    $region5: #{tpu_custom_call.1} parent=1 // loop_body
      %s21 = ssub.s32 %s16, 1
      %s22 = ssub.s32 %s16, 2
      %s29 = sadd.s32 1, %s24
      %p30 = scmp.ge.s32.totalorder %s29, 1
      %s31 = scalar_select %p30, 0, %s29
      %s32 = sadd.s32 1, %s23
      %s33 = scalar_select %p30, %s32, %s23
      %p34 = scmp.ge.s32.totalorder %s33, 2
      %s35 = scalar_select %p34, 0, %s33
      %s37 = sadd.s32 %s36, 1
      %p40 = scmp.eq.s32.totalorder %s16, 1
      %p41 = scmp.ne.s32.totalorder %s36, %s38
      %p42 = scmp.eq.s32.totalorder %s16, 0
      %p43 = por %p41, %p42
      %p44 = scmp.ne.s32.totalorder %s36, %s38
      %p45 = scmp.eq.s32.totalorder %s21, 1
      %p46 = por %p44, %p45
      %p47 = scmp.ne.s32.totalorder %s38, %s39
      %p48 = scmp.eq.s32.totalorder %s21, 0
      %p49 = por %p47, %p48
      %p50 = scmp.ne.s32.totalorder %s38, %s39
      %p51 = scmp.eq.s32.totalorder %s22, 1
      %p52 = por %p50, %p51
      %p54 = scmp.ne.s32.totalorder %s39, %s53
      %p55 = scmp.eq.s32.totalorder %s22, 0
      %p56 = por %p54, %p55
      %s57 = ssub.s32 %s23, %s35
      %p58 = scmp.eq.s32.totalorder %s57, 0
      %s60 = sadd.s32 %s59, 1
      %s61 = scalar_select %p58, %s59, %s60
      %p64 = pneg %p58
      %p65 = scmp.eq.s32.totalorder %s16, 1
      %p66 = por %p64, %p65
      %p67 = scmp.ne.s32.totalorder %s59, %s62
      %p68 = scmp.eq.s32.totalorder %s16, 0
      %p69 = por %p67, %p68
      %p70 = scmp.ne.s32.totalorder %s59, %s62
      %p71 = scmp.eq.s32.totalorder %s21, 1
      %p72 = por %p70, %p71
      %p73 = scmp.ne.s32.totalorder %s62, %s63
      %p74 = scmp.eq.s32.totalorder %s21, 0
      %p75 = por %p73, %p74
      %p76 = scmp.ne.s32.totalorder %s62, %s63
      %p77 = scmp.eq.s32.totalorder %s22, 1
      %p78 = por %p76, %p77
      %p80 = scmp.ne.s32.totalorder %s63, %s79
      %p81 = scmp.eq.s32.totalorder %s22, 0
      %p82 = por %p80, %p81
      %s83 = ssub.s32 %s23, %s35
      %s84 = ssub.s32 %s24, %s31
      %s85 = sor.u32 %s83, %s84
      %p86 = scmp.eq.s32.totalorder %s85, 0
      %s88 = sadd.s32 %s87, 1
      %s89 = scalar_select %p86, %s87, %s88
      %p92 = pneg %p86
      %p93 = scmp.eq.s32.totalorder %s16, 1
      %p94 = por %p92, %p93
      %p95 = scmp.ne.s32.totalorder %s87, %s90
      %p96 = scmp.eq.s32.totalorder %s16, 0
      %p97 = por %p95, %p96
      %p98 = scmp.ne.s32.totalorder %s87, %s90
      %p99 = scmp.eq.s32.totalorder %s21, 1
      %p100 = por %p98, %p99
      %p101 = scmp.ne.s32.totalorder %s90, %s91
      %p102 = scmp.eq.s32.totalorder %s21, 0
      %p103 = por %p101, %p102
      %p104 = scmp.ne.s32.totalorder %s90, %s91
      %p105 = scmp.eq.s32.totalorder %s22, 1
      %p106 = por %p104, %p105
      %p108 = scmp.ne.s32.totalorder %s91, %s107
      %p109 = scmp.eq.s32.totalorder %s22, 0
      %p110 = por %p108, %p109
      %s111 = ssub.s32 %s23, %s35
      %s112 = ssub.s32 %s24, %s31
      %s113 = sor.u32 %s111, %s112
      %p114 = scmp.eq.s32.totalorder %s113, 0
      %s116 = sadd.s32 %s115, 1
      %s117 = scalar_select %p114, %s115, %s116
      %p120 = pneg %p114
      %p121 = scmp.eq.s32.totalorder %s16, 1
      %p122 = por %p120, %p121
      %p123 = scmp.ne.s32.totalorder %s115, %s118
      %p124 = scmp.eq.s32.totalorder %s16, 0
      %p125 = por %p123, %p124
      %p126 = scmp.ne.s32.totalorder %s115, %s118
      %p127 = scmp.eq.s32.totalorder %s21, 1
      %p128 = por %p126, %p127
      %p129 = scmp.ne.s32.totalorder %s118, %s119
      %p130 = scmp.eq.s32.totalorder %s21, 0
      %p131 = por %p129, %p130
      %p132 = scmp.ne.s32.totalorder %s118, %s119
      %p133 = scmp.eq.s32.totalorder %s22, 1
      %p134 = por %p132, %p133
      %p136 = scmp.ne.s32.totalorder %s119, %s135
      %p137 = scmp.eq.s32.totalorder %s22, 0
      %p138 = por %p136, %p137
      %p139 = scmp.le.s32.totalorder 1, %s16
      %p140 = scmp.lt.s32.totalorder %s16, 3
      %p141 = pnand %p139, %p140
      %p142 = pneg %p141
      // Predicated region
      $region9: #{tpu_custom_call.1} parent=5 // pred_check
        _
      $region10: #{tpu_custom_call.1} parent=5 // pred_check_branch
        %144 = sbr.rel (%p141) target = $region12
      $region11: #{tpu_custom_call.1} parent=5 // pred_region
        %s145 = ssub.s32 %s16, 1
        // Predicated region
        $region13: #{tpu_custom_call.1} parent=11 // pred_check
          %p146 = pneg %p49
        $region14: #{tpu_custom_call.1} parent=11 // pred_check_branch
          %148 = sbr.rel (%p146) target = $region16
        $region15: #{tpu_custom_call.1} parent=11 // pred_region
          %150 = vsyncadd [#allocation5], 0
          %s152 = sshll.u32 %s0, 4
          %s153 = int_to_ptr.vmem [resolvable:$true] %s152
          %155 = dma.vmem_to_smem %s153, 16, [#allocation2], [#allocation5]
        $region16: #{tpu_custom_call.1} parent=11 // pred_fallthru
          _
      $region12: #{tpu_custom_call.1} parent=5 // pred_fallthru
        _
      %p156 = scmp.lt.s32.totalorder %s16, 2
      // Predicated region
      $region17: #{tpu_custom_call.1} parent=5 // pred_check
        %p157 = pneg %p156
      $region18: #{tpu_custom_call.1} parent=5 // pred_check_branch
        %159 = sbr.rel (%p157) target = $region20
      $region19: #{tpu_custom_call.1} parent=5 // pred_region
        // Predicated region
        $region21: #{tpu_custom_call.1} parent=19 // pred_check
          %p160 = pneg %p69
        $region22: #{tpu_custom_call.1} parent=19 // pred_check_branch
          %162 = sbr.rel (%p160) target = $region24
        $region23: #{tpu_custom_call.1} parent=19 // pred_region
          %p163 = scmp.lt.s32.totalorder %s23, 1
          %s164 = scalar_select %p163, %s23, 1
          %s165 = smul.addr %s164, 4
          %s166 = scalar_lea.vmem %s1, %s165
        $region24: #{tpu_custom_call.1} parent=19 // pred_fallthru
          _
        // Predicated region
        $region25: #{tpu_custom_call.1} parent=19 // pred_check
          %p167 = pneg %p97
        $region26: #{tpu_custom_call.1} parent=19 // pred_check_branch
          %169 = sbr.rel (%p167) target = $region28
        $region27: #{tpu_custom_call.1} parent=19 // pred_region
          %s170 = sand.u32 %s87, 1
          %s171 = scalar_lea.sflag [#allocation3], %s170
          %s172 = sand.u32 %s87, 1
          %s173 = smul.addr %s172, 8
          %s174 = scalar_lea.vmem [#allocation6], %s173
          %s175 = smul.u32 2, %s24
          %177 = vsyncadd %s171, 0
          %s178 = smul.addr %s23, 2
          %s179 = sadd.s32 %s175, %s178
          %s180 = smul.addr %s179, 4
          %s181 = scalar_lea.hbm %s2, %s180
          %s183 = sshll.u32 %s181, 4
          %s184 = int_to_ptr.hbm [resolvable:$true] %s183
          %s185 = sshll.u32 %s174, 4
          %s186 = int_to_ptr.vmem [resolvable:$true] %s185
          %188 = dma.hbm_to_vmem [thread:$0]  %s184, 128, %s186, %s171
        $region28: #{tpu_custom_call.1} parent=19 // pred_fallthru
          _
      $region20: #{tpu_custom_call.1} parent=5 // pred_fallthru
        _
      %p189 = scmp.le.s32.totalorder 1, %s16
      %p190 = scmp.lt.s32.totalorder %s16, 3
      %p191 = pnand %p189, %p190
      %p192 = pneg %p191
      // Predicated region
      $region29: #{tpu_custom_call.1} parent=5 // pred_check
        _
      $region30: #{tpu_custom_call.1} parent=5 // pred_check_branch
        %194 = sbr.rel (%p191) target = $region32
      $region31: #{tpu_custom_call.1} parent=5 // pred_region
        %s195 = ssub.s32 %s16, 1
        // Predicated region
        $region33: #{tpu_custom_call.1} parent=31 // pred_check
          %p196 = pneg %p49
        $region34: #{tpu_custom_call.1} parent=31 // pred_check_branch
          %198 = sbr.rel (%p196) target = $region36
        $region35: #{tpu_custom_call.1} parent=31 // pred_region
          %200 = dma.done [#allocation5], 16
        $region36: #{tpu_custom_call.1} parent=31 // pred_fallthru
          _
        %s201 = sand.u32 %s90, 1
        %s202 = scalar_lea.sflag [#allocation3], %s201
        %s203 = sand.u32 %s90, 1
        %s204 = smul.addr %s203, 8
        %s205 = scalar_lea.vmem [#allocation6], %s204
        // Predicated region
        $region37: #{tpu_custom_call.1} parent=31 // pred_check
          %p206 = pneg %p103
        $region38: #{tpu_custom_call.1} parent=31 // pred_check_branch
          %208 = sbr.rel (%p206) target = $region40
        $region39: #{tpu_custom_call.1} parent=31 // pred_region
          %210 = dma.done %s202, 128
        $region40: #{tpu_custom_call.1} parent=31 // pred_fallthru
          _
        %211 = sfence
        %p212 = pneg %p49
        %p213 = pneg %p46
        %p214 = scmp.lt.s32.totalorder %s25, 1
        %s215 = scalar_select %p214, %s25, 1
        %s216 = smul.addr %s215, 4
        %s217 = scalar_lea.vmem %s1, %s216
        %p218 = pneg %p75
        %p219 = pneg %p72
        %s220 = sand.u32 %s90, 1
        %s221 = scalar_lea.sflag [#allocation3], %s220
        %s222 = sand.u32 %s90, 1
        %s223 = smul.addr %s222, 8
        %s224 = scalar_lea.vmem [#allocation6], %s223
        %p225 = pneg %p103
        %p226 = pneg %p100
        %p227 = pneg %p131
        %p228 = pneg %p128
        %s229 = sand.u32 %s118, 1
        %s230 = scalar_lea.sflag [#allocation4], %s229
        %s231 = sand.u32 %s118, 1
        %s232 = smul.addr %s231, 16
        %s233 = scalar_lea.vmem [#allocation7], %s232
        %p234 = scmp.lt.s32.totalorder %s25, 1
        %s235 = scalar_select %p234, %s25, 1
        %s236 = smul.addr %s235, 4
        %s237 = scalar_lea.vmem %s1, %s236
        %s238 = smul.u32 2, %s26
        %s239 = smul.u32 2, %s26
        %s240 = sld [smem:[#allocation2 + %s25]]
        %v241 = vld [vmem:[%s205] sm:$0xff]
        %v242 = vld [vmem:[%s237] sm:$0xf]
        %244 = vset.pattern.permute.xlu0 0
        %245 = vperm.xlu0 %244, %v242
        %v246 = vpop.permute.xlu0 %245
        %249 = vst [vmem:[#allocation1] ss:$2 sm:$0xff] %v241
        %v250 = vld.sshfl [vmem:[#allocation1] sm:$0xff pattern:$0x75316420]
        %v251 = vld.sshfl [vmem:[#allocation1 + $0x8] sm:$0xff pattern:$0x75316420]
        %v254 = vmul.f32 %v246, %v250
        %v255 = vmul.f32 %v246, %v251
        %vm256 = vcmask 1043456
        %v257 = vsel %vm256, %v254, 0.0
        %v258 = vrot.slane %v257, 4
        %v259 = vadd.f32 %v257, %v258
        %v260 = vrot.slane %v259, 2
        %v261 = vadd.f32 %v259, %v260
        %v262 = vrot.slane %v261, 1
        %v263 = vadd.f32 %v261, %v262
        %v264 = vsel %vm256, %v255, 0.0
        %v265 = vrot.slane %v264, 4
        %v266 = vadd.f32 %v264, %v265
        %v267 = vrot.slane %v266, 2
        %v268 = vadd.f32 %v266, %v267
        %v269 = vrot.slane %v268, 1
        %v270 = vadd.f32 %v268, %v269
        %v271 = vstv %s240
        %v272 = vmul.f32 %v263, %v271
        %v273 = vmul.f32 %v270, %v271
        %v274 = vmul.f32 %v246, %v272
        %v275 = vmul.f32 %v246, %v273
        %v278 = vrot.slane %v275, 4
        %v279 = vsel %vm256, %v274, %v278
        %v281 = vsub.f32 %v241, %v279
        %v283 = vunpack.c.l.s4 839922192
        %v284 = vunpack.c.0.s8 %v283
        %v285 = vperm.slane %v246, %v284
        %287 = vst [vmem:[%s233] sm:$0xff] %v285
        %s288 = scalar_lea.vmem %s233, 8 [#allocation7]
        %289 = vst [vmem:[%s288] sm:$0xff] %v281
        %s290 = sand.u32 %s118, 1
        %s291 = scalar_lea.sflag [#allocation4], %s290
        %s292 = sand.u32 %s118, 1
        %s293 = smul.addr %s292, 16
        %s294 = scalar_lea.vmem [#allocation7], %s293
        // Predicated region
        $region41: #{tpu_custom_call.1} parent=31 // pred_check
          %p295 = pneg %p128
        $region42: #{tpu_custom_call.1} parent=31 // pred_check_branch
          %297 = sbr.rel (%p295) target = $region44
        $region43: #{tpu_custom_call.1} parent=31 // pred_region
          %s298 = smul.u32 2, %s26
          %300 = vsyncadd %s291, 0
          %s301 = smul.addr %s25, 4
          %s302 = sadd.s32 %s298, %s301
          %s303 = smul.addr %s302, 4
          %s304 = scalar_lea.hbm %s3, %s303
          %s305 = sshll.u32 %s294, 4
          %s306 = int_to_ptr.vmem [resolvable:$true] %s305
          %s307 = sshll.u32 %s304, 4
          %s308 = int_to_ptr.hbm [resolvable:$true] %s307
          %313 = dma.vmem_to_hbm [thread:$0]  %s306, 256, %s308, %s291, 128, 128, 8
        $region44: #{tpu_custom_call.1} parent=31 // pred_fallthru
          _
      $region32: #{tpu_custom_call.1} parent=5 // pred_fallthru
        _
      %p314 = scmp.le.s32.totalorder 2, %s16
      // Predicated region
      $region45: #{tpu_custom_call.1} parent=5 // pred_check
        %p315 = pneg %p314
      $region46: #{tpu_custom_call.1} parent=5 // pred_check_branch
        %317 = sbr.rel (%p315) target = $region48
      $region47: #{tpu_custom_call.1} parent=5 // pred_region
        %s318 = ssub.s32 %s16, 2
        // Predicated region
        $region49: #{tpu_custom_call.1} parent=47 // pred_check
          %p319 = pneg %p134
        $region50: #{tpu_custom_call.1} parent=47 // pred_check_branch
          %321 = sbr.rel (%p319) target = $region52
        $region51: #{tpu_custom_call.1} parent=47 // pred_region
          %s322 = sand.u32 %s119, 1
          %s323 = scalar_lea.sflag [#allocation4], %s322
          %s324 = sand.u32 %s119, 1
          %s325 = smul.addr %s324, 16
          %s326 = scalar_lea.vmem [#allocation7], %s325
          %328 = dma.done %s323, 256
        $region52: #{tpu_custom_call.1} parent=47 // pred_fallthru
          _
      $region48: #{tpu_custom_call.1} parent=5 // pred_fallthru
        _
    $region6: #{tpu_custom_call.1} parent=1 // loop_footer
      %s20 = sadd.s32 1, %s16
    $region7: #{tpu_custom_call.1} parent=1 // loop_footer_branch
      %15 = sbr.rel target = $region3
    $region8: #{tpu_custom_call.1} parent=1 // loop_exit
      _
    %329 = vsyncpa [#allocation3], 1
    %s330 = scalar_lea.sflag [#allocation3], 1
    %331 = vsyncpa %s330, 1
    %332 = vsyncpa [#allocation4], 1
    %s333 = scalar_lea.sflag [#allocation4], 1
    %334 = vsyncpa %s333, 1
    %335 = vsyncpa [#allocation5], 1
    %s336 = scalar_lea.sflag [#allocation5], 1
    %337 = vsyncpa %s336, 1

</llo_original>
